<compile_context>
chip_gen: v5e
topology: v5e:2x2
jax: 0.10.0
libtpu: 0.0.40
codegen_flags: <defaults>
</compile_context>

<pallas_src>
import jax
import jax.numpy as jnp
from jax.experimental import pallas as pl
from jax.experimental.pallas import tpu as pltpu
import numpy as np


NEG_SLOPE = 0.2


def _leaky_relu(x, slope=NEG_SLOPE):
    return jnp.where(x > 0, x, slope * x)


def decoder_kernel(x_ref, w0_ref, b0_ref, w1_ref, b1_ref, w2_ref, b2_ref, o_ref):
    # Fused 3-layer MLP on one packed (TB, in_dim*p) batch tile, fully resident
    # in VMEM.  Matmuls hit the MXU with f32 accumulation; bias + LeakyReLU run
    # in f32 on the VPU.  Inter-layer casts are no-ops on the f32 path.
    x = x_ref[...]
    h = jnp.dot(x, w0_ref[...], preferred_element_type=jnp.float32) + b0_ref[...]
    h = _leaky_relu(h)
    h = jnp.dot(h.astype(w1_ref.dtype), w1_ref[...],
                preferred_element_type=jnp.float32) + b1_ref[...]
    h = _leaky_relu(h)
    y = jnp.dot(h.astype(w2_ref.dtype), w2_ref[...],
                preferred_element_type=jnp.float32) + b2_ref[...]
    o_ref[...] = y.astype(o_ref.dtype)


def _round_up(x, m):
    return (x + m - 1) // m * m


def _cdiv(a, b):
    return -(-a // b)


def _pack_params(params, p, dtype):
    """Block-diagonal (kron(I_p, W)) weights + lane-tiled f32 biases."""
    eye = jnp.eye(p, dtype=jnp.float32)
    packed = {}
    for i in range(3):
        w = params[f"w{i}"].astype(jnp.float32)
        b = params[f"b{i}"].astype(jnp.float32)
        packed[f"w{i}"] = jnp.kron(eye, w).astype(dtype)   # (in*p, out*p)
        packed[f"b{i}"] = jnp.tile(b, (1, p))              # (1, out*p), f32
    return packed


def decoder_forward(x, params, *, block_b=8192, pack=8):
    """Decoder forward pass.

    x: (B, in_dim) array (f32 or bf16) — used as-is, no wrapper cast/pad copy.
    params: dict of transposed weights / row biases (see init_params).
    block_b: batch tile size in ORIGINAL rows per grid step (amortizes the
             fixed per-grid-step pipeline overhead).
    pack: requested lane-packing factor (power of two); p=8 suits v6e/v7x,
          p=4 suits v5e's 128-wide MXU.  Auto-reduced to a divisor of B so the
          packing reshape stays a free, contiguous relabel.
    """
    B, in_dim = x.shape
    out_dim = params["w2"].shape[1]
    dtype = x.dtype

    # Largest power-of-two pack factor (<= requested) dividing B.
    p = max(1, pack)
    while p > 1 and B % p != 0:
        p //= 2
    Bp = B // p

    xp = x.reshape(Bp, in_dim * p)          # metadata-only, no HBM traffic
    pk = _pack_params(params, p, dtype)     # tiny, built host-side

    # Batch tile (packed rows): multiple of 8 sublanes, capped by the problem.
    tb = min(_round_up(max(block_b // p, 8), 8), _round_up(Bp, 8))
    n_steps = _cdiv(Bp, tb)
    if n_steps > 1 and n_steps % 2 == 1:
        # v7x: even step count load-balances the two TensorCores.
        tb = _round_up(_cdiv(Bp, n_steps + 1), 8)
        n_steps = _cdiv(Bp, tb)

    # Weights / biases: full-array blocks, constant index -> resident in VMEM
    # (DMA'd once, reused by every batch tile).
    resident = lambda a: pl.BlockSpec(a.shape, lambda i: (0, 0))

    dsize = jnp.dtype(dtype).itemsize
    layer_flops = in_dim * 16 + 16 * 8 + 8 * out_dim
    flops = 2 * Bp * p * p * layer_flops                     # MXU work incl. block-diag zeros
    bytes_accessed = (Bp * in_dim * p * dsize                # read x
                      + Bp * out_dim * p * dsize             # write y (x.dtype)
                      + p * p * layer_flops * dsize)         # packed weights
    cost = pl.CostEstimate(flops=flops, transcendentals=0,
                           bytes_accessed=bytes_accessed)

    # NOTE: if xprof shows exposed input DMA, pipeline_mode=pl.Buffered(3) on
    # the x BlockSpec is the next (small) lever; omitted here as optional.
    out_p = pl.pallas_call(
        decoder_kernel,
        out_shape=jax.ShapeDtypeStruct((Bp, out_dim * p), dtype),
        grid=(n_steps,),
        in_specs=[
            pl.BlockSpec((tb, in_dim * p), lambda i: (i, 0)),
            resident(pk["w0"]), resident(pk["b0"]),
            resident(pk["w1"]), resident(pk["b1"]),
            resident(pk["w2"]), resident(pk["b2"]),
        ],
        out_specs=pl.BlockSpec((tb, out_dim * p), lambda i: (i, 0)),
        compiler_params=pltpu.CompilerParams(
            dimension_semantics=("parallel",),   # v7x: shard batch tiles across TCs
        ),
        cost_estimate=cost,
    )(xp, pk["w0"], pk["b0"], pk["w1"], pk["b1"], pk["w2"], pk["b2"])

    return out_p.reshape(B, out_dim)        # metadata-only un-pack


def init_params(key, in_dim, out_dim):
    """Deterministic init mirroring nn.Linear default (uniform +/- 1/sqrt(fan_in)).
    Weights are stored as (in_features, out_features) = PyTorch weight.T."""
    dims = [(in_dim, 16), (16, 8), (8, out_dim)]
    params = {}
    for i, (fan_in, fan_out) in enumerate(dims):
        key, kw, kb = jax.random.split(key, 3)
        bound = 1.0 / np.sqrt(fan_in)
        params[f"w{i}"] = jax.random.uniform(
            kw, (fan_in, fan_out), jnp.float32, -bound, bound)
        params[f"b{i}"] = jax.random.uniform(
            kb, (1, fan_out), jnp.float32, -bound, bound)
    return params


def decoder_ref(x, params):
    """Pure-JAX reference for correctness checking (always f32)."""
    x = x.astype(jnp.float32)
    h = _leaky_relu(x @ params["w0"] + params["b0"])
    h = _leaky_relu(h @ params["w1"] + params["b1"])
    return h @ params["w2"] + params["b2"]


if __name__ == "__main__":
    IN_DIM, OUT_DIM = 32, 4
    key = jax.random.PRNGKey(0)
    key, kp = jax.random.split(key)
    params = init_params(kp, IN_DIM, OUT_DIM)

    # --- small f32 sanity (single grid step, pack=8) ---
    key, kx = jax.random.split(key)
    x = jax.random.normal(kx, (64, IN_DIM), dtype=jnp.float32)
    out = jax.block_until_ready(decoder_forward(x, params))
    np.testing.assert_allclose(np.asarray(out), np.asarray(decoder_ref(x, params)),
                               rtol=1e-5, atol=1e-5)

    # --- multi-step grid, evenly divisible (4 steps of 128 packed rows) ---
    key, kx2 = jax.random.split(key)
    x2 = jax.random.normal(kx2, (4096, IN_DIM), dtype=jnp.float32)
    out2 = jax.block_until_ready(decoder_forward(x2, params, block_b=1024))
    np.testing.assert_allclose(np.asarray(out2), np.asarray(decoder_ref(x2, params)),
                               rtol=1e-5, atol=1e-5)

    # --- ragged batch: non-divisible last block handled by Pallas, no jnp.pad ---
    key, kx3 = jax.random.split(key)
    x3 = jax.random.normal(kx3, (5000, IN_DIM), dtype=jnp.float32)
    out3 = jax.block_until_ready(decoder_forward(x3, params, block_b=1024))
    np.testing.assert_allclose(np.asarray(out3), np.asarray(decoder_ref(x3, params)),
                               rtol=1e-5, atol=1e-5)

    # --- bf16 inputs flow straight through (no wrapper cast/copy), bf16 output ---
    x4 = x3.astype(jnp.bfloat16)
    out4 = jax.block_until_ready(decoder_forward(x4, params, block_b=2048))
    np.testing.assert_allclose(np.asarray(out4, dtype=np.float32),
                               np.asarray(decoder_ref(x4, params)),
                               rtol=3e-2, atol=3e-2)

    print("KERNEL_OK")
</pallas_src>

<mosaic_0001>
module attributes {stable_mosaic.version = 11 : i64} {
  func.func @decoder_kernel(%arg0: i32, %arg1: memref<8x256xf32, #tpu.memory_space<vmem>>, %arg2: memref<256x128xf32, #tpu.memory_space<vmem>>, %arg3: memref<1x128xf32, #tpu.memory_space<vmem>>, %arg4: memref<128x64xf32, #tpu.memory_space<vmem>>, %arg5: memref<1x64xf32, #tpu.memory_space<vmem>>, %arg6: memref<64x32xf32, #tpu.memory_space<vmem>>, %arg7: memref<1x32xf32, #tpu.memory_space<vmem>>, %arg8: memref<8x32xf32, #tpu.memory_space<vmem>>) attributes {dimension_semantics = [#tpu.dimension_semantics<parallel>], iteration_bounds = array<i64: 1>, scalar_prefetch = 0 : i64, scratch_operands = 0 : i64, tpu.core_type = #tpu.core_type<tc>, window_params = [{transform_indices = @transform_0, window_bounds = array<i64: 8, 256>}, {pipeline_mode = #tpu.pipeline_mode<synchronous>, transform_indices = @transform_1, window_bounds = array<i64: 256, 128>}, {pipeline_mode = #tpu.pipeline_mode<synchronous>, transform_indices = @transform_2, window_bounds = array<i64: 1, 128>}, {pipeline_mode = #tpu.pipeline_mode<synchronous>, transform_indices = @transform_3, window_bounds = array<i64: 128, 64>}, {pipeline_mode = #tpu.pipeline_mode<synchronous>, transform_indices = @transform_4, window_bounds = array<i64: 1, 64>}, {pipeline_mode = #tpu.pipeline_mode<synchronous>, transform_indices = @transform_5, window_bounds = array<i64: 64, 32>}, {pipeline_mode = #tpu.pipeline_mode<synchronous>, transform_indices = @transform_6, window_bounds = array<i64: 1, 32>}, {transform_indices = @transform_7, window_bounds = array<i64: 8, 32>}]} {
    %c0 = arith.constant 0 : index
    %c0_0 = arith.constant 0 : index
    %0 = vector.load %arg1[%c0, %c0_0] : memref<8x256xf32, #tpu.memory_space<vmem>>, vector<8x256xf32>
    %c0_1 = arith.constant 0 : index
    %c0_2 = arith.constant 0 : index
    %1 = vector.load %arg2[%c0_1, %c0_2] : memref<256x128xf32, #tpu.memory_space<vmem>>, vector<256x128xf32>
    %cst = arith.constant dense<0.000000e+00> : vector<8x128xf32>
    %2 = tpu.matmul %0, %1, %cst {dimension_numbers = #tpu.dot_dimension_numbers<[1], [0], [0], [1], [0, 0, 1, 1], [], []>} : vector<8x256xf32>, vector<256x128xf32>, vector<8x128xf32> -> vector<8x128xf32>
    %c0_3 = arith.constant 0 : index
    %c0_4 = arith.constant 0 : index
    %3 = vector.load %arg3[%c0_3, %c0_4] : memref<1x128xf32, #tpu.memory_space<vmem>>, vector<1x128xf32>
    %4 = vector.broadcast %3 : vector<1x128xf32> to vector<8x128xf32>
    %5 = arith.addf %2, %4 : vector<8x128xf32>
    %cst_5 = arith.constant 0.000000e+00 : f32
    %6 = vector.broadcast %cst_5 : f32 to vector<8x128xf32>
    %7 = arith.cmpf ogt, %5, %6 : vector<8x128xf32>
    %cst_6 = arith.constant 2.000000e-01 : f32
    %8 = vector.broadcast %cst_6 : f32 to vector<8x128xf32>
    %9 = arith.mulf %8, %5 : vector<8x128xf32>
    %10 = arith.select %7, %5, %9 : vector<8x128xi1>, vector<8x128xf32>
    %c0_7 = arith.constant 0 : index
    %c0_8 = arith.constant 0 : index
    %11 = vector.load %arg4[%c0_7, %c0_8] : memref<128x64xf32, #tpu.memory_space<vmem>>, vector<128x64xf32>
    %cst_9 = arith.constant dense<0.000000e+00> : vector<8x64xf32>
    %12 = tpu.matmul %10, %11, %cst_9 {dimension_numbers = #tpu.dot_dimension_numbers<[1], [0], [0], [1], [0, 0, 1, 1], [], []>} : vector<8x128xf32>, vector<128x64xf32>, vector<8x64xf32> -> vector<8x64xf32>
    %c0_10 = arith.constant 0 : index
    %c0_11 = arith.constant 0 : index
    %13 = vector.load %arg5[%c0_10, %c0_11] : memref<1x64xf32, #tpu.memory_space<vmem>>, vector<1x64xf32>
    %14 = vector.broadcast %13 : vector<1x64xf32> to vector<8x64xf32>
    %15 = arith.addf %12, %14 : vector<8x64xf32>
    %cst_12 = arith.constant 0.000000e+00 : f32
    %16 = vector.broadcast %cst_12 : f32 to vector<8x64xf32>
    %17 = arith.cmpf ogt, %15, %16 : vector<8x64xf32>
    %cst_13 = arith.constant 2.000000e-01 : f32
    %18 = vector.broadcast %cst_13 : f32 to vector<8x64xf32>
    %19 = arith.mulf %18, %15 : vector<8x64xf32>
    %20 = arith.select %17, %15, %19 : vector<8x64xi1>, vector<8x64xf32>
    %c0_14 = arith.constant 0 : index
    %c0_15 = arith.constant 0 : index
    %21 = vector.load %arg6[%c0_14, %c0_15] : memref<64x32xf32, #tpu.memory_space<vmem>>, vector<64x32xf32>
    %cst_16 = arith.constant dense<0.000000e+00> : vector<8x32xf32>
    %22 = tpu.matmul %20, %21, %cst_16 {dimension_numbers = #tpu.dot_dimension_numbers<[1], [0], [0], [1], [0, 0, 1, 1], [], []>} : vector<8x64xf32>, vector<64x32xf32>, vector<8x32xf32> -> vector<8x32xf32>
    %c0_17 = arith.constant 0 : index
    %c0_18 = arith.constant 0 : index
    %23 = vector.load %arg7[%c0_17, %c0_18] : memref<1x32xf32, #tpu.memory_space<vmem>>, vector<1x32xf32>
    %24 = vector.broadcast %23 : vector<1x32xf32> to vector<8x32xf32>
    %25 = arith.addf %22, %24 : vector<8x32xf32>
    %c0_19 = arith.constant 0 : index
    %c0_20 = arith.constant 0 : index
    %26 = vector.load %arg8[%c0_19, %c0_20] : memref<8x32xf32, #tpu.memory_space<vmem>>, vector<8x32xf32>
    tpu.vector_store %arg8[%c0_19, %c0_20], %25 {strides = array<i32>} : memref<8x32xf32, #tpu.memory_space<vmem>>, vector<8x32xf32>,
    return
  }
  func.func @transform_0(%arg0: i32) -> (i32, i32) {
    %c0_i32 = arith.constant 0 : i32
    %c0_i32_0 = arith.constant 0 : i32
    return %arg0, %c0_i32 : i32, i32
  }
  func.func @transform_1(%arg0: i32) -> (i32, i32) {
    %c0_i32 = arith.constant 0 : i32
    %c0_i32_0 = arith.constant 0 : i32
    %c0_i32_1 = arith.constant 0 : i32
    return %c0_i32, %c0_i32_0 : i32, i32
  }
  func.func @transform_2(%arg0: i32) -> (i32, i32) {
    %c0_i32 = arith.constant 0 : i32
    %c0_i32_0 = arith.constant 0 : i32
    %c0_i32_1 = arith.constant 0 : i32
    return %c0_i32, %c0_i32_0 : i32, i32
  }
  func.func @transform_3(%arg0: i32) -> (i32, i32) {
    %c0_i32 = arith.constant 0 : i32
    %c0_i32_0 = arith.constant 0 : i32
    %c0_i32_1 = arith.constant 0 : i32
    return %c0_i32, %c0_i32_0 : i32, i32
  }
  func.func @transform_4(%arg0: i32) -> (i32, i32) {
    %c0_i32 = arith.constant 0 : i32
    %c0_i32_0 = arith.constant 0 : i32
    %c0_i32_1 = arith.constant 0 : i32
    return %c0_i32, %c0_i32_0 : i32, i32
  }
  func.func @transform_5(%arg0: i32) -> (i32, i32) {
    %c0_i32 = arith.constant 0 : i32
    %c0_i32_0 = arith.constant 0 : i32
    %c0_i32_1 = arith.constant 0 : i32
    return %c0_i32, %c0_i32_0 : i32, i32
  }
  func.func @transform_6(%arg0: i32) -> (i32, i32) {
    %c0_i32 = arith.constant 0 : i32
    %c0_i32_0 = arith.constant 0 : i32
    %c0_i32_1 = arith.constant 0 : i32
    return %c0_i32, %c0_i32_0 : i32, i32
  }
  func.func @transform_7(%arg0: i32) -> (i32, i32) {
    %c0_i32 = arith.constant 0 : i32
    %c0_i32_0 = arith.constant 0 : i32
    return %arg0, %c0_i32 : i32, i32
  }
}

</mosaic_0001>

<llo_original>
// kernel: tpu_custom_call.1
$region0: #{tpu_custom_call.1}
  #allocation0 [shape = 'u32[]', space=smem, size = 0x4, offset = 0x4, fixed_abs, tag = 'smem constant byte address 0x4 - core index']
  #allocation1 [shape = 'u32[72,128]{1,0:T(1,128)}', space=vmem, size = 0x9000, scoped, tag = 'internal scratch']
  %s0 = inlined_call_operand.vmem [shape: f32[8,256], index: 0, kind: input, shape index: {}]
  %s1 = inlined_call_operand.vmem [shape: f32[256,128], index: 1, kind: input, shape index: {}]
  %s2 = inlined_call_operand.vmem [shape: f32[1,128], index: 2, kind: input, shape index: {}]
  %s3 = inlined_call_operand.vmem [shape: f32[128,64], index: 3, kind: input, shape index: {}]
  %s4 = inlined_call_operand.vmem [shape: f32[1,64], index: 4, kind: input, shape index: {}]
  %s5 = inlined_call_operand.vmem [shape: f32[64,32], index: 5, kind: input, shape index: {}]
  %s6 = inlined_call_operand.vmem [shape: f32[1,32], index: 6, kind: input, shape index: {}]
  %s7 = inlined_call_operand.hbm [shape: f32[8,32], index: 7, kind: output, shape index: {}]
  %s8 = sld [smem:[#allocation0]]
  $region38: #{tpu_custom_call.1} parent=0
    _
  %s10 = ssub.s32 1, %s8
  %s11 = scalar_select 0, %s10, %s8
  $region1: #{tpu_custom_call.1} parent=0
    #allocation2 [shape = 'u8[4096]{0}', space=vmem, size = 0x1000, scoped, tag = 'output window, operand 0, single buffered']
    #allocation3 [shape = 's32[1]{0}', space=sflag, size = 0x4, scoped, tag = 'scoped memory for tpu_custom_call.1']
    %12 = vsyncpa [#allocation3], 0
    // Predicated region
    $region2: #{tpu_custom_call.1} parent=1 // pred_check
      _
    $region3: #{tpu_custom_call.1} parent=1 // pred_check_branch
      %14 = sbr.rel (0) target = $region5
    $region4: #{tpu_custom_call.1} parent=1 // pred_region
      _
    $region5: #{tpu_custom_call.1} parent=1 // pred_fallthru
      _
    // Predicated region
    $region6: #{tpu_custom_call.1} parent=1 // pred_check
      _
    $region7: #{tpu_custom_call.1} parent=1 // pred_check_branch
      %16 = sbr.rel (0) target = $region9
    $region8: #{tpu_custom_call.1} parent=1 // pred_region
      _
    $region9: #{tpu_custom_call.1} parent=1 // pred_fallthru
      _
    // Predicated region
    $region10: #{tpu_custom_call.1} parent=1 // pred_check
      _
    $region11: #{tpu_custom_call.1} parent=1 // pred_check_branch
      %18 = sbr.rel (0) target = $region13
    $region12: #{tpu_custom_call.1} parent=1 // pred_region
      _
    $region13: #{tpu_custom_call.1} parent=1 // pred_fallthru
      _
    // Predicated region
    $region14: #{tpu_custom_call.1} parent=1 // pred_check
      _
    $region15: #{tpu_custom_call.1} parent=1 // pred_check_branch
      %20 = sbr.rel (0) target = $region17
    $region16: #{tpu_custom_call.1} parent=1 // pred_region
      _
    $region17: #{tpu_custom_call.1} parent=1 // pred_fallthru
      _
    // Predicated region
    $region18: #{tpu_custom_call.1} parent=1 // pred_check
      _
    $region19: #{tpu_custom_call.1} parent=1 // pred_check_branch
      %22 = sbr.rel (0) target = $region21
    $region20: #{tpu_custom_call.1} parent=1 // pred_region
      _
    $region21: #{tpu_custom_call.1} parent=1 // pred_fallthru
      _
    // Predicated region
    $region22: #{tpu_custom_call.1} parent=1 // pred_check
      _
    $region23: #{tpu_custom_call.1} parent=1 // pred_check_branch
      %24 = sbr.rel (0) target = $region25
    $region24: #{tpu_custom_call.1} parent=1 // pred_region
      _
    $region25: #{tpu_custom_call.1} parent=1 // pred_fallthru
      _
    // Predicated region
    $region26: #{tpu_custom_call.1} parent=1 // pred_check
      _
    $region27: #{tpu_custom_call.1} parent=1 // pred_check_branch
      %26 = sbr.rel (0) target = $region29
    $region28: #{tpu_custom_call.1} parent=1 // pred_region
      _
    $region29: #{tpu_custom_call.1} parent=1 // pred_fallthru
      _
    %v27 = vld [vmem:[%s0] sm:$0xff]
    %v28 = vld [vmem:[%s0 + $0x8] sm:$0xff]
    %v29 = vld [vmem:[%s1] sm:$0xff]
    %v30 = vld [vmem:[%s1 + $0x8] sm:$0xff]
    %v31 = vld [vmem:[%s1 + $0x10] sm:$0xff]
    %v32 = vld [vmem:[%s1 + $0x18] sm:$0xff]
    %v33 = vld [vmem:[%s1 + $0x20] sm:$0xff]
    %v34 = vld [vmem:[%s1 + $0x28] sm:$0xff]
    %v35 = vld [vmem:[%s1 + $0x30] sm:$0xff]
    %v36 = vld [vmem:[%s1 + $0x38] sm:$0xff]
    %v37 = vld [vmem:[%s1 + $0x40] sm:$0xff]
    %v38 = vld [vmem:[%s1 + $0x48] sm:$0xff]
    %v39 = vld [vmem:[%s1 + $0x50] sm:$0xff]
    %v40 = vld [vmem:[%s1 + $0x58] sm:$0xff]
    %v41 = vld [vmem:[%s1 + $0x60] sm:$0xff]
    %v42 = vld [vmem:[%s1 + $0x68] sm:$0xff]
    %v43 = vld [vmem:[%s1 + $0x70] sm:$0xff]
    %v44 = vld [vmem:[%s1 + $0x78] sm:$0xff]
    %v45 = vld [vmem:[%s1 + $0x80] sm:$0xff]
    %v46 = vld [vmem:[%s1 + $0x88] sm:$0xff]
    %v47 = vld [vmem:[%s1 + $0x90] sm:$0xff]
    %v48 = vld [vmem:[%s1 + $0x98] sm:$0xff]
    %v49 = vld [vmem:[%s1 + $0xa0] sm:$0xff]
    %v50 = vld [vmem:[%s1 + $0xa8] sm:$0xff]
    %v51 = vld [vmem:[%s1 + $0xb0] sm:$0xff]
    %v52 = vld [vmem:[%s1 + $0xb8] sm:$0xff]
    %v53 = vld [vmem:[%s1 + $0xc0] sm:$0xff]
    %v54 = vld [vmem:[%s1 + $0xc8] sm:$0xff]
    %v55 = vld [vmem:[%s1 + $0xd0] sm:$0xff]
    %v56 = vld [vmem:[%s1 + $0xd8] sm:$0xff]
    %v57 = vld [vmem:[%s1 + $0xe0] sm:$0xff]
    %v58 = vld [vmem:[%s1 + $0xe8] sm:$0xff]
    %v59 = vld [vmem:[%s1 + $0xf0] sm:$0xff]
    %v60 = vld [vmem:[%s1 + $0xf8] sm:$0xff]
    %v61 = vld [vmem:[%s2] sm:$0x1]
    %v63 = vperm.slane %v61, 0
    %65 = vmatpush.msra.mxu0 %v44
    %66 = vmatpush.msra.mxu0 %v43
    %67 = vmatpush.msra.mxu0 %v42
    %68 = vmatpush.msra.mxu0 %v41
    %69 = vmatpush.msra.mxu0 %v40
    %70 = vmatpush.msra.mxu0 %v39
    %71 = vmatpush.msra.mxu0 %v38
    %72 = vmatpush.msra.mxu0 %v37
    %73 = vmatpush.msra.mxu0 %v36
    %74 = vmatpush.msra.mxu0 %v35
    %75 = vmatpush.msra.mxu0 %v34
    %76 = vmatpush.msra.mxu0 %v33
    %77 = vmatpush.msra.mxu0 %v32
    %78 = vmatpush.msra.mxu0 %v31
    %79 = vmatpush.msra.mxu0 %v30
    %80 = vmatpush.msra.mxu0 %v29
    %81 = vmatmul.f32.gmra.mxu0 %v27
    %v82 = vpop.f32.mrf.mxu0
    %v83 = vadd.f32 %v63, %v82
    %84 = vdwg.mxu0
    %85 = vmatpush.msra.mxu0 %v60
    %86 = vmatpush.msra.mxu0 %v59
    %87 = vmatpush.msra.mxu0 %v58
    %88 = vmatpush.msra.mxu0 %v57
    %89 = vmatpush.msra.mxu0 %v56
    %90 = vmatpush.msra.mxu0 %v55
    %91 = vmatpush.msra.mxu0 %v54
    %92 = vmatpush.msra.mxu0 %v53
    %93 = vmatpush.msra.mxu0 %v52
    %94 = vmatpush.msra.mxu0 %v51
    %95 = vmatpush.msra.mxu0 %v50
    %96 = vmatpush.msra.mxu0 %v49
    %97 = vmatpush.msra.mxu0 %v48
    %98 = vmatpush.msra.mxu0 %v47
    %99 = vmatpush.msra.mxu0 %v46
    %100 = vmatpush.msra.mxu0 %v45
    %101 = vmatmul.f32.gmra.mxu0 %v28
    %v102 = vpop.f32.mrf.mxu0
    %v103 = vadd.f32 %v83, %v102
    %104 = vdwg.mxu0
    %vm105 = vcmp.gt.f32.partialorder %v103, 0.0
    %v106 = vmul.f32 %v103, 0.2
    %v107 = vsel %vm105, %v103, %v106
    %v108 = vld [vmem:[%s3] sm:$0xff]
    %v109 = vld [vmem:[%s3 + $0x8] sm:$0xff]
    %v110 = vld [vmem:[%s3 + $0x10] sm:$0xff]
    %v111 = vld [vmem:[%s3 + $0x18] sm:$0xff]
    %v112 = vld [vmem:[%s3 + $0x20] sm:$0xff]
    %v113 = vld [vmem:[%s3 + $0x28] sm:$0xff]
    %v114 = vld [vmem:[%s3 + $0x30] sm:$0xff]
    %v115 = vld [vmem:[%s3 + $0x38] sm:$0xff]
    %v116 = vld [vmem:[%s3 + $0x40] sm:$0xff]
    %v117 = vld [vmem:[%s3 + $0x48] sm:$0xff]
    %v118 = vld [vmem:[%s3 + $0x50] sm:$0xff]
    %v119 = vld [vmem:[%s3 + $0x58] sm:$0xff]
    %v120 = vld [vmem:[%s3 + $0x60] sm:$0xff]
    %v121 = vld [vmem:[%s3 + $0x68] sm:$0xff]
    %v122 = vld [vmem:[%s3 + $0x70] sm:$0xff]
    %v123 = vld [vmem:[%s3 + $0x78] sm:$0xff]
    %v124 = vld [vmem:[%s4] sm:$0x1]
    %v126 = vperm.slane %v124, 0
    %128 = vmatpush.msra.mxu0 %v123
    %129 = vmatpush.msra.mxu0 %v122
    %130 = vmatpush.msra.mxu0 %v121
    %131 = vmatpush.msra.mxu0 %v120
    %132 = vmatpush.msra.mxu0 %v119
    %133 = vmatpush.msra.mxu0 %v118
    %134 = vmatpush.msra.mxu0 %v117
    %135 = vmatpush.msra.mxu0 %v116
    %136 = vmatpush.msra.mxu0 %v115
    %137 = vmatpush.msra.mxu0 %v114
    %138 = vmatpush.msra.mxu0 %v113
    %139 = vmatpush.msra.mxu0 %v112
    %140 = vmatpush.msra.mxu0 %v111
    %141 = vmatpush.msra.mxu0 %v110
    %142 = vmatpush.msra.mxu0 %v109
    %143 = vmatpush.msra.mxu0 %v108
    %144 = vmatmul.f32.gmra.mxu0 %v107
    %v145 = vpop.f32.mrf.mxu0
    %v146 = vadd.f32 %v126, %v145
    %147 = vdwg.mxu0
    %vm148 = vcmp.gt.f32.partialorder %v146, 0.0
    %v149 = vmul.f32 %v146, 0.2
    %v150 = vsel %vm148, %v146, %v149
    %v151 = vld [vmem:[%s5] sm:$0xff]
    %v152 = vld [vmem:[%s5 + $0x8] sm:$0xff]
    %v153 = vld [vmem:[%s5 + $0x10] sm:$0xff]
    %v154 = vld [vmem:[%s5 + $0x18] sm:$0xff]
    %v155 = vld [vmem:[%s5 + $0x20] sm:$0xff]
    %v156 = vld [vmem:[%s5 + $0x28] sm:$0xff]
    %v157 = vld [vmem:[%s5 + $0x30] sm:$0xff]
    %v158 = vld [vmem:[%s5 + $0x38] sm:$0xff]
    %v159 = vld [vmem:[%s6] sm:$0x1]
    %v161 = vperm.slane %v159, 0
    %vm163 = vcmask 523264
    %v165 = vsel %vm163, %v150, 0
    %167 = vmatpush.msra.mxu0 0.0
    %168 = vmatpush.msra.mxu0 0.0
    %169 = vmatpush.msra.mxu0 0.0
    %170 = vmatpush.msra.mxu0 0.0
    %171 = vmatpush.msra.mxu0 0.0
    %172 = vmatpush.msra.mxu0 0.0
    %173 = vmatpush.msra.mxu0 0.0
    %174 = vmatpush.msra.mxu0 0.0
    %175 = vmatpush.msra.mxu0 %v158
    %176 = vmatpush.msra.mxu0 %v157
    %177 = vmatpush.msra.mxu0 %v156
    %178 = vmatpush.msra.mxu0 %v155
    %179 = vmatpush.msra.mxu0 %v154
    %180 = vmatpush.msra.mxu0 %v153
    %181 = vmatpush.msra.mxu0 %v152
    %182 = vmatpush.msra.mxu0 %v151
    %183 = vmatmul.f32.gmra.mxu0 %v165
    %v184 = vpop.f32.mrf.mxu0
    %v185 = vadd.f32 %v161, %v184
    %186 = vdwg.mxu0
    %vm187 = vcmask 261120
    %188 = vst.msk [vmem:[#allocation2] sm:$0xff] %vm187, %v185
    // Predicated region
    $region30: #{tpu_custom_call.1} parent=1 // pred_check
      _
    $region31: #{tpu_custom_call.1} parent=1 // pred_check_branch
      %190 = sbr.rel (0) target = $region33
    $region32: #{tpu_custom_call.1} parent=1 // pred_region
      %192 = vsyncadd [#allocation3], 0
      %s194 = sshll.u32 [#allocation2], 4
      %s195 = int_to_ptr.vmem [resolvable:$true] %s194
      %s196 = sshll.u32 %s7, 4
      %s197 = int_to_ptr.hbm [resolvable:$true] %s196
      %199 = dma.vmem_to_hbm [thread:$0]  %s195, 128, %s197, [#allocation3]
    $region33: #{tpu_custom_call.1} parent=1 // pred_fallthru
      _
    // Predicated region
    $region34: #{tpu_custom_call.1} parent=1 // pred_check
      _
    $region35: #{tpu_custom_call.1} parent=1 // pred_check_branch
      %201 = sbr.rel (0) target = $region37
    $region36: #{tpu_custom_call.1} parent=1 // pred_region
      %203 = dma.done [#allocation3], 128
    $region37: #{tpu_custom_call.1} parent=1 // pred_fallthru
      _
    %204 = vsyncpa [#allocation3], 1

</llo_original>
